<compile_context>
chip_gen: v5e
topology: v5e:2x2
jax: 0.10.0
libtpu: 0.0.40
codegen_flags: <defaults>
</compile_context>

<pallas_src>
import functools

import jax
import jax.numpy as jnp
from jax.experimental import pallas as pl
from jax.experimental.pallas import tpu as pltpu


SUBLANE = 8  # sublane granularity for the batch tile


def _round_up(x, m):
    return ((x + m - 1) // m) * m


def attention_kernel(v_ref, q_ref, wv_ref, wq_ref, bq_ref, wx_ref, bx_ref, o_ref):
    """Fused: relu(v @ Wv^T + q @ Wq^T + bq) @ Wx^T + bx.

    v_ref : (BN, Vf)        q_ref : (BN, Qf)
    wv_ref: (Vf, mid)       wq_ref: (Qf, mid)       bq_ref: (1, mid)
    wx_ref: (mid, G)        bx_ref: (1, G)
    o_ref : (BN, G)
    """
    # Two accumulating MXU dots (f32 accumulation) replace the conv/linear pair.
    h = jnp.dot(v_ref[...], wv_ref[...], preferred_element_type=jnp.float32)
    h = h + jnp.dot(q_ref[...], wq_ref[...], preferred_element_type=jnp.float32)
    h = jnp.maximum(h + bq_ref[...].astype(jnp.float32), 0.0)  # bias + ReLU in f32

    # Final 1x1 conv projection. Keep the accumulator in f32 (weights are
    # promoted), matching the f32 PyTorch reference numerics.
    out = jnp.dot(h, wx_ref[...].astype(jnp.float32),
                  preferred_element_type=jnp.float32)
    out = out + bx_ref[...].astype(jnp.float32)
    o_ref[...] = out.astype(o_ref.dtype)


def prepare_params(params):
    """One-time weight prep (hoisted out of the per-call path).

    PyTorch param shapes:
      v_conv.weight: (mid, Vf, 1, 1)   q_lin.weight: (mid, Qf)   q_lin.bias: (mid,)
      x_conv.weight: (G, mid, 1, 1)    x_conv.bias : (G,)
    """
    wv = params["v_conv_w"][:, :, 0, 0].T      # (Vf, mid)
    wq = params["q_lin_w"].T                   # (Qf, mid)
    bq = params["q_lin_b"][None, :]            # (1, mid)
    wx = params["x_conv_w"][:, :, 0, 0].T      # (mid, G)
    bx = params["x_conv_b"][None, :]           # (1, G)
    return {"wv": wv, "wq": wq, "bq": bq, "wx": wx, "bx": bx}


@functools.partial(jax.jit, static_argnames=("block_n",))
def attention_forward(v, q, prep, block_n=8192):
    """v: (N, v_features), q: (N, q_features) -> (N, glimpses, 1, 1) (NCHW)."""
    N, Vf = v.shape
    Qf = q.shape[1]
    mid = prep["wv"].shape[1]
    G = prep["wx"].shape[1]                    # static (array shape)
    out_dtype = jnp.promote_types(v.dtype, q.dtype)

    # Batch tile: multiple of 8 sublanes, large enough to amortize the ~0.35us
    # per-grid-step overhead. Double-buffered working set stays well under the
    # v7x 32 MiB scoped VMEM default even with 128-lane VMEM row padding.
    bn = min(block_n, _round_up(N, SUBLANE))
    # v7x: make sure the parallel N axis has >=2 grid steps when N is big enough
    # to split, so both TensorCores get work.
    if pl.cdiv(N, bn) < 2 and N > 2 * SUBLANE:
        bn = _round_up(pl.cdiv(N, 2), SUBLANE)
    grid = (pl.cdiv(N, bn),)

    out = pl.pallas_call(
        attention_kernel,
        out_shape=jax.ShapeDtypeStruct((N, G), out_dtype),
        grid=grid,
        in_specs=[
            pl.BlockSpec((bn, Vf), lambda i: (i, 0)),       # v: tiled over N
            pl.BlockSpec((bn, Qf), lambda i: (i, 0)),       # q: tiled over N
            pl.BlockSpec((Vf, mid), lambda i: (0, 0)),      # weights: resident
            pl.BlockSpec((Qf, mid), lambda i: (0, 0)),
            pl.BlockSpec((1, mid), lambda i: (0, 0)),
            pl.BlockSpec((mid, G), lambda i: (0, 0)),
            pl.BlockSpec((1, G), lambda i: (0, 0)),
        ],
        out_specs=pl.BlockSpec((bn, G), lambda i: (i, 0)),
        compiler_params=pltpu.CompilerParams(
            dimension_semantics=("parallel",),              # shard N across TCs (v7x)
            vmem_limit_bytes=48 * 1024 * 1024,
        ),
    )(v, q, prep["wv"], prep["wq"], prep["bq"], prep["wx"], prep["bx"])

    # Back to NCHW (N, glimpses, 1, 1) — no slicing, output is already unpadded.
    return out.reshape(N, G, 1, 1)


def init_params(key, v_features, q_features, mid_features, glimpses, dtype=jnp.float32):
    k1, k2, k3, k4, k5 = jax.random.split(key, 5)
    scale_v = 1.0 / jnp.sqrt(v_features)
    scale_q = 1.0 / jnp.sqrt(q_features)
    scale_x = 1.0 / jnp.sqrt(mid_features)
    return {
        "v_conv_w": jax.random.normal(k1, (mid_features, v_features, 1, 1), dtype) * scale_v,
        "q_lin_w":  jax.random.normal(k2, (mid_features, q_features), dtype) * scale_q,
        "q_lin_b":  jax.random.normal(k3, (mid_features,), dtype) * scale_q,
        "x_conv_w": jax.random.normal(k4, (glimpses, mid_features, 1, 1), dtype) * scale_x,
        "x_conv_b": jax.random.normal(k5, (glimpses,), dtype) * scale_x,
    }


if __name__ == "__main__":
    # Small, module-consistent shapes.
    N = 2
    v_features = 16
    q_features = 32
    mid_features = 32
    glimpses = 4

    key = jax.random.PRNGKey(0)
    kv, kq, kp = jax.random.split(key, 3)

    v = jax.random.normal(kv, (N, v_features), jnp.float32)
    q = jax.random.normal(kq, (N, q_features), jnp.float32)
    params = init_params(kp, v_features, q_features, mid_features, glimpses)

    prep = prepare_params(params)             # one-time weight prep (not per call)
    out = attention_forward(v, q, prep)
    out = jax.block_until_ready(out)

    # Reference (plain JAX) check against the original (untransformed) params.
    wv = params["v_conv_w"][:, :, 0, 0]
    wq = params["q_lin_w"]
    wx = params["x_conv_w"][:, :, 0, 0]
    h_ref = jnp.maximum(v @ wv.T + q @ wq.T + params["q_lin_b"], 0.0)
    ref = (h_ref @ wx.T + params["x_conv_b"]).reshape(N, glimpses, 1, 1)

    assert out.shape == (N, glimpses, 1, 1)
    assert jnp.allclose(out, ref, atol=1e-5, rtol=1e-5)

    print("KERNEL_OK")
</pallas_src>

<mosaic_0001>
module attributes {stable_mosaic.version = 11 : i64} {
  func.func @attention_kernel(%arg0: i32, %arg1: memref<8x16xf32, #tpu.memory_space<vmem>>, %arg2: memref<8x32xf32, #tpu.memory_space<vmem>>, %arg3: memref<16x32xf32, #tpu.memory_space<vmem>>, %arg4: memref<32x32xf32, #tpu.memory_space<vmem>>, %arg5: memref<1x32xf32, #tpu.memory_space<vmem>>, %arg6: memref<32x4xf32, #tpu.memory_space<vmem>>, %arg7: memref<1x4xf32, #tpu.memory_space<vmem>>, %arg8: memref<8x4xf32, #tpu.memory_space<vmem>>) attributes {dimension_semantics = [#tpu.dimension_semantics<parallel>], iteration_bounds = array<i64: 1>, scalar_prefetch = 0 : i64, scratch_operands = 0 : i64, tpu.core_type = #tpu.core_type<tc>, window_params = [{transform_indices = @transform_0, window_bounds = array<i64: 8, 16>}, {transform_indices = @transform_1, window_bounds = array<i64: 8, 32>}, {pipeline_mode = #tpu.pipeline_mode<synchronous>, transform_indices = @transform_2, window_bounds = array<i64: 16, 32>}, {pipeline_mode = #tpu.pipeline_mode<synchronous>, transform_indices = @transform_3, window_bounds = array<i64: 32, 32>}, {pipeline_mode = #tpu.pipeline_mode<synchronous>, transform_indices = @transform_4, window_bounds = array<i64: 1, 32>}, {pipeline_mode = #tpu.pipeline_mode<synchronous>, transform_indices = @transform_5, window_bounds = array<i64: 32, 4>}, {pipeline_mode = #tpu.pipeline_mode<synchronous>, transform_indices = @transform_6, window_bounds = array<i64: 1, 4>}, {transform_indices = @transform_7, window_bounds = array<i64: 8, 4>}]} {
    %c0 = arith.constant 0 : index
    %c0_0 = arith.constant 0 : index
    %0 = vector.load %arg1[%c0, %c0_0] : memref<8x16xf32, #tpu.memory_space<vmem>>, vector<8x16xf32>
    %c0_1 = arith.constant 0 : index
    %c0_2 = arith.constant 0 : index
    %1 = vector.load %arg3[%c0_1, %c0_2] : memref<16x32xf32, #tpu.memory_space<vmem>>, vector<16x32xf32>
    %cst = arith.constant dense<0.000000e+00> : vector<8x32xf32>
    %2 = tpu.matmul %0, %1, %cst {dimension_numbers = #tpu.dot_dimension_numbers<[1], [0], [0], [1], [0, 0, 1, 1], [], []>} : vector<8x16xf32>, vector<16x32xf32>, vector<8x32xf32> -> vector<8x32xf32>
    %c0_3 = arith.constant 0 : index
    %c0_4 = arith.constant 0 : index
    %3 = vector.load %arg2[%c0_3, %c0_4] : memref<8x32xf32, #tpu.memory_space<vmem>>, vector<8x32xf32>
    %c0_5 = arith.constant 0 : index
    %c0_6 = arith.constant 0 : index
    %4 = vector.load %arg4[%c0_5, %c0_6] : memref<32x32xf32, #tpu.memory_space<vmem>>, vector<32x32xf32>
    %cst_7 = arith.constant dense<0.000000e+00> : vector<8x32xf32>
    %5 = tpu.matmul %3, %4, %cst_7 {dimension_numbers = #tpu.dot_dimension_numbers<[1], [0], [0], [1], [0, 0, 1, 1], [], []>} : vector<8x32xf32>, vector<32x32xf32>, vector<8x32xf32> -> vector<8x32xf32>
    %6 = arith.addf %2, %5 : vector<8x32xf32>
    %c0_8 = arith.constant 0 : index
    %c0_9 = arith.constant 0 : index
    %7 = vector.load %arg5[%c0_8, %c0_9] : memref<1x32xf32, #tpu.memory_space<vmem>>, vector<1x32xf32>
    %8 = vector.broadcast %7 : vector<1x32xf32> to vector<8x32xf32>
    %9 = arith.addf %6, %8 : vector<8x32xf32>
    %cst_10 = arith.constant 0.000000e+00 : f32
    %10 = vector.broadcast %cst_10 : f32 to vector<8x32xf32>
    %11 = arith.maximumf %9, %10 : vector<8x32xf32>
    %c0_11 = arith.constant 0 : index
    %c0_12 = arith.constant 0 : index
    %12 = vector.load %arg6[%c0_11, %c0_12] : memref<32x4xf32, #tpu.memory_space<vmem>>, vector<32x4xf32>
    %cst_13 = arith.constant dense<0.000000e+00> : vector<8x4xf32>
    %13 = tpu.matmul %11, %12, %cst_13 {dimension_numbers = #tpu.dot_dimension_numbers<[1], [0], [0], [1], [0, 0, 1, 1], [], []>} : vector<8x32xf32>, vector<32x4xf32>, vector<8x4xf32> -> vector<8x4xf32>
    %c0_14 = arith.constant 0 : index
    %c0_15 = arith.constant 0 : index
    %14 = vector.load %arg7[%c0_14, %c0_15] : memref<1x4xf32, #tpu.memory_space<vmem>>, vector<1x4xf32>
    %15 = vector.broadcast %14 : vector<1x4xf32> to vector<8x4xf32>
    %16 = arith.addf %13, %15 : vector<8x4xf32>
    %c0_16 = arith.constant 0 : index
    %c0_17 = arith.constant 0 : index
    %17 = vector.load %arg8[%c0_16, %c0_17] : memref<8x4xf32, #tpu.memory_space<vmem>>, vector<8x4xf32>
    tpu.vector_store %arg8[%c0_16, %c0_17], %16 {strides = array<i32>} : memref<8x4xf32, #tpu.memory_space<vmem>>, vector<8x4xf32>,
    return
  }
  func.func @transform_0(%arg0: i32) -> (i32, i32) {
    %c0_i32 = arith.constant 0 : i32
    %c0_i32_0 = arith.constant 0 : i32
    return %arg0, %c0_i32 : i32, i32
  }
  func.func @transform_1(%arg0: i32) -> (i32, i32) {
    %c0_i32 = arith.constant 0 : i32
    %c0_i32_0 = arith.constant 0 : i32
    return %arg0, %c0_i32 : i32, i32
  }
  func.func @transform_2(%arg0: i32) -> (i32, i32) {
    %c0_i32 = arith.constant 0 : i32
    %c0_i32_0 = arith.constant 0 : i32
    %c0_i32_1 = arith.constant 0 : i32
    return %c0_i32, %c0_i32_0 : i32, i32
  }
  func.func @transform_3(%arg0: i32) -> (i32, i32) {
    %c0_i32 = arith.constant 0 : i32
    %c0_i32_0 = arith.constant 0 : i32
    %c0_i32_1 = arith.constant 0 : i32
    return %c0_i32, %c0_i32_0 : i32, i32
  }
  func.func @transform_4(%arg0: i32) -> (i32, i32) {
    %c0_i32 = arith.constant 0 : i32
    %c0_i32_0 = arith.constant 0 : i32
    %c0_i32_1 = arith.constant 0 : i32
    return %c0_i32, %c0_i32_0 : i32, i32
  }
  func.func @transform_5(%arg0: i32) -> (i32, i32) {
    %c0_i32 = arith.constant 0 : i32
    %c0_i32_0 = arith.constant 0 : i32
    %c0_i32_1 = arith.constant 0 : i32
    return %c0_i32, %c0_i32_0 : i32, i32
  }
  func.func @transform_6(%arg0: i32) -> (i32, i32) {
    %c0_i32 = arith.constant 0 : i32
    %c0_i32_0 = arith.constant 0 : i32
    %c0_i32_1 = arith.constant 0 : i32
    return %c0_i32, %c0_i32_0 : i32, i32
  }
  func.func @transform_7(%arg0: i32) -> (i32, i32) {
    %c0_i32 = arith.constant 0 : i32
    %c0_i32_0 = arith.constant 0 : i32
    return %arg0, %c0_i32 : i32, i32
  }
}

</mosaic_0001>

<llo_original>
// kernel: attention_forward.1
$region0: #{attention_forward.1}
  #allocation0 [shape = 'u32[]', space=smem, size = 0x4, offset = 0x4, fixed_abs, tag = 'smem constant byte address 0x4 - core index']
  #allocation1 [shape = 'u32[72,128]{1,0:T(1,128)}', space=vmem, size = 0x9000, scoped, tag = 'internal scratch']
  %s0 = inlined_call_operand.vmem [shape: f32[2,16], index: 0, kind: input, shape index: {}]
  %s1 = inlined_call_operand.vmem [shape: f32[2,32], index: 1, kind: input, shape index: {}]
  %s2 = inlined_call_operand.hbm [shape: f32[16,32], index: 2, kind: input, shape index: {}]
  %s3 = inlined_call_operand.vmem [shape: f32[32,32], index: 3, kind: input, shape index: {}]
  %s4 = inlined_call_operand.vmem [shape: f32[1,32], index: 4, kind: input, shape index: {}]
  %s5 = inlined_call_operand.vmem [shape: f32[32,4], index: 5, kind: input, shape index: {}]
  %s6 = inlined_call_operand.hbm [shape: f32[1,4], index: 6, kind: input, shape index: {}]
  %s7 = inlined_call_operand.hbm [shape: f32[2,4], index: 7, kind: output, shape index: {}]
  %s8 = sld [smem:[#allocation0]]
  $region46: #{attention_forward.1} parent=0
    _
  %s10 = ssub.s32 1, %s8
  %s11 = scalar_select 0, %s10, %s8
  $region1: #{attention_forward.1} parent=0
    #allocation2 [shape = 'u8[8192]{0}', space=vmem, size = 0x2000, scoped, tag = 'input window, operand 2, single buffered']
    #allocation3 [shape = 's32[1]{0}', space=sflag, size = 0x4, scoped, tag = 'scoped memory for attention_forward.1']
    #allocation4 [shape = 's32[1]{0}', space=sflag, size = 0x4, scoped, tag = 'scoped memory for attention_forward.1']
    #allocation5 [shape = 'u8[512]{0}', space=vmem, size = 0x400, scoped, tag = 'input window, operand 6, single buffered']
    #allocation6 [shape = 's32[1]{0}', space=sflag, size = 0x4, scoped, tag = 'scoped memory for attention_forward.1']
    #allocation7 [shape = 'u8[4096]{0}', space=vmem, size = 0x1000, scoped, tag = 'output window, operand 0, single buffered']
    %12 = vsyncpa [#allocation3], 0
    %13 = vsyncpa [#allocation6], 0
    %14 = vsyncpa [#allocation4], 0
    // Predicated region
    $region2: #{attention_forward.1} parent=1 // pred_check
      _
    $region3: #{attention_forward.1} parent=1 // pred_check_branch
      %16 = sbr.rel (0) target = $region5
    $region4: #{attention_forward.1} parent=1 // pred_region
      _
    $region5: #{attention_forward.1} parent=1 // pred_fallthru
      _
    // Predicated region
    $region6: #{attention_forward.1} parent=1 // pred_check
      _
    $region7: #{attention_forward.1} parent=1 // pred_check_branch
      %18 = sbr.rel (0) target = $region9
    $region8: #{attention_forward.1} parent=1 // pred_region
      _
    $region9: #{attention_forward.1} parent=1 // pred_fallthru
      _
    // Predicated region
    $region10: #{attention_forward.1} parent=1 // pred_check
      _
    $region11: #{attention_forward.1} parent=1 // pred_check_branch
      %20 = sbr.rel (0) target = $region13
    $region12: #{attention_forward.1} parent=1 // pred_region
      %22 = vsyncadd [#allocation3], 0
      %s23 = sshll.u32 %s2, 4
      %s24 = int_to_ptr.hbm [resolvable:$true] %s23
      %s25 = sshll.u32 [#allocation2], 4
      %s26 = int_to_ptr.vmem [resolvable:$true] %s25
      %31 = dma.hbm_to_vmem [thread:$0]  %s24, 256, %s26, [#allocation3], 128, 128, 8
    $region13: #{attention_forward.1} parent=1 // pred_fallthru
      _
    // Predicated region
    $region14: #{attention_forward.1} parent=1 // pred_check
      _
    $region15: #{attention_forward.1} parent=1 // pred_check_branch
      %33 = sbr.rel (0) target = $region17
    $region16: #{attention_forward.1} parent=1 // pred_region
      _
    $region17: #{attention_forward.1} parent=1 // pred_fallthru
      _
    // Predicated region
    $region18: #{attention_forward.1} parent=1 // pred_check
      _
    $region19: #{attention_forward.1} parent=1 // pred_check_branch
      %35 = sbr.rel (0) target = $region21
    $region20: #{attention_forward.1} parent=1 // pred_region
      _
    $region21: #{attention_forward.1} parent=1 // pred_fallthru
      _
    // Predicated region
    $region22: #{attention_forward.1} parent=1 // pred_check
      _
    $region23: #{attention_forward.1} parent=1 // pred_check_branch
      %37 = sbr.rel (0) target = $region25
    $region24: #{attention_forward.1} parent=1 // pred_region
      _
    $region25: #{attention_forward.1} parent=1 // pred_fallthru
      _
    // Predicated region
    $region26: #{attention_forward.1} parent=1 // pred_check
      _
    $region27: #{attention_forward.1} parent=1 // pred_check_branch
      %39 = sbr.rel (0) target = $region29
    $region28: #{attention_forward.1} parent=1 // pred_region
      %41 = vsyncadd [#allocation6], 0
      %s43 = sshll.u32 %s6, 4
      %s44 = int_to_ptr.hbm [resolvable:$true] %s43
      %s45 = sshll.u32 [#allocation5], 4
      %s46 = int_to_ptr.vmem [resolvable:$true] %s45
      %48 = dma.hbm_to_vmem [thread:$0]  %s44, 16, %s46, [#allocation6]
    $region29: #{attention_forward.1} parent=1 // pred_fallthru
      _
    // Predicated region
    $region30: #{attention_forward.1} parent=1 // pred_check
      _
    $region31: #{attention_forward.1} parent=1 // pred_check_branch
      %50 = sbr.rel (0) target = $region33
    $region32: #{attention_forward.1} parent=1 // pred_region
      %52 = dma.done [#allocation3], 256
    $region33: #{attention_forward.1} parent=1 // pred_fallthru
      _
    // Predicated region
    $region34: #{attention_forward.1} parent=1 // pred_check
      _
    $region35: #{attention_forward.1} parent=1 // pred_check_branch
      %54 = sbr.rel (0) target = $region37
    $region36: #{attention_forward.1} parent=1 // pred_region
      %56 = dma.done [#allocation6], 16
    $region37: #{attention_forward.1} parent=1 // pred_fallthru
      _
    %v57 = vld [vmem:[%s0] sm:$0xff]
    %v58 = vld [vmem:[#allocation2] sm:$0xff]
    %v59 = vld [vmem:[#allocation2 + $0x8] sm:$0xff]
    %v60 = vld [vmem:[%s1] sm:$0xff]
    %v61 = vld [vmem:[%s3] sm:$0xff]
    %v62 = vld [vmem:[%s3 + $0x8] sm:$0xff]
    %v63 = vld [vmem:[%s3 + $0x10] sm:$0xff]
    %v64 = vld [vmem:[%s3 + $0x18] sm:$0xff]
    %vm65 = vcmask 261120
    %v67 = vsel %vm65, %v60, 0
    %69 = vmatpush.msra.mxu0 0.0
    %70 = vmatpush.msra.mxu0 0.0
    %71 = vmatpush.msra.mxu0 0.0
    %72 = vmatpush.msra.mxu0 0.0
    %73 = vmatpush.msra.mxu0 0.0
    %74 = vmatpush.msra.mxu0 0.0
    %75 = vmatpush.msra.mxu0 0.0
    %76 = vmatpush.msra.mxu0 0.0
    %77 = vmatpush.msra.mxu0 0.0
    %78 = vmatpush.msra.mxu0 0.0
    %79 = vmatpush.msra.mxu0 0.0
    %80 = vmatpush.msra.mxu0 0.0
    %81 = vmatpush.msra.mxu0 %v64
    %82 = vmatpush.msra.mxu0 %v63
    %83 = vmatpush.msra.mxu0 %v62
    %84 = vmatpush.msra.mxu0 %v61
    %85 = vmatmul.f32.gmra.mxu0 %v67
    %v86 = vpop.f32.mrf.mxu0
    %v87 = vadd.f32 0.0, %v86
    %88 = vdwg.mxu0
    %vm89 = vcmask 130048
    %v91 = vsel %vm89, %v57, 0
    %93 = vmatpush.msra.mxu0 0.0
    %94 = vmatpush.msra.mxu0 0.0
    %95 = vmatpush.msra.mxu0 0.0
    %96 = vmatpush.msra.mxu0 0.0
    %97 = vmatpush.msra.mxu0 0.0
    %98 = vmatpush.msra.mxu0 0.0
    %99 = vmatpush.msra.mxu0 0.0
    %100 = vmatpush.msra.mxu0 0.0
    %101 = vmatpush.msra.mxu0 0.0
    %102 = vmatpush.msra.mxu0 0.0
    %103 = vmatpush.msra.mxu0 0.0
    %104 = vmatpush.msra.mxu0 0.0
    %105 = vmatpush.msra.mxu0 0.0
    %106 = vmatpush.msra.mxu0 0.0
    %107 = vmatpush.msra.mxu0 %v59
    %108 = vmatpush.msra.mxu0 %v58
    %109 = vmatmul.f32.gmra.mxu0 %v91
    %v110 = vpop.f32.mrf.mxu0
    %v111 = vadd.f32 %v87, %v110
    %112 = vdwg.mxu0
    %v113 = vld [vmem:[%s4] sm:$0x1]
    %v115 = vperm.slane %v113, 0
    %v117 = vadd.f32 %v111, %v115
    %v118 = vmax.f32 %v117, 0.0
    %v119 = vld [vmem:[%s5] sm:$0xff]
    %v120 = vld [vmem:[%s5 + $0x8] sm:$0xff]
    %v121 = vld [vmem:[%s5 + $0x10] sm:$0xff]
    %v122 = vld [vmem:[%s5 + $0x18] sm:$0xff]
    %v123 = vld [vmem:[#allocation5] sm:$0x1]
    %v125 = vperm.slane %v123, 0
    %v128 = vsel %vm65, %v118, 0
    %130 = vmatpush.msra.mxu0 0.0
    %131 = vmatpush.msra.mxu0 0.0
    %132 = vmatpush.msra.mxu0 0.0
    %133 = vmatpush.msra.mxu0 0.0
    %134 = vmatpush.msra.mxu0 0.0
    %135 = vmatpush.msra.mxu0 0.0
    %136 = vmatpush.msra.mxu0 0.0
    %137 = vmatpush.msra.mxu0 0.0
    %138 = vmatpush.msra.mxu0 0.0
    %139 = vmatpush.msra.mxu0 0.0
    %140 = vmatpush.msra.mxu0 0.0
    %141 = vmatpush.msra.mxu0 0.0
    %142 = vmatpush.msra.mxu0 %v122
    %143 = vmatpush.msra.mxu0 %v121
    %144 = vmatpush.msra.mxu0 %v120
    %145 = vmatpush.msra.mxu0 %v119
    %146 = vmatmul.f32.gmra.mxu0 %v128
    %v147 = vpop.f32.mrf.mxu0
    %v148 = vadd.f32 %v125, %v147
    %149 = vdwg.mxu0
    %vm150 = vcmask 31744
    %151 = vst.msk [vmem:[#allocation7] sm:$0xff] %vm150, %v148
    // Predicated region
    $region38: #{attention_forward.1} parent=1 // pred_check
      _
    $region39: #{attention_forward.1} parent=1 // pred_check_branch
      %153 = sbr.rel (0) target = $region41
    $region40: #{attention_forward.1} parent=1 // pred_region
      %155 = vsyncadd [#allocation4], 96
      %s156 = sshll.u32 [#allocation7], 4
      %s157 = int_to_ptr.vmem [resolvable:$true] %s156
      %s158 = sshll.u32 %s7, 4
      %s159 = int_to_ptr.hbm [resolvable:$true] %s158
      %164 = dma.vmem_to_hbm [thread:$0]  %s157, 32, %s159, [#allocation4], 32, 32, 2
    $region41: #{attention_forward.1} parent=1 // pred_fallthru
      _
    // Predicated region
    $region42: #{attention_forward.1} parent=1 // pred_check
      _
    $region43: #{attention_forward.1} parent=1 // pred_check_branch
      %166 = sbr.rel (0) target = $region45
    $region44: #{attention_forward.1} parent=1 // pred_region
      %168 = dma.done [#allocation4], 128
    $region45: #{attention_forward.1} parent=1 // pred_fallthru
      _
    %169 = vsyncpa [#allocation3], 1
    %170 = vsyncpa [#allocation6], 1
    %171 = vsyncpa [#allocation4], 1

</llo_original>
